<compile_context>
chip_gen: v6e
topology: v6e:2x2x1
jax: 0.10.0
libtpu: 0.0.40
codegen_flags: <defaults>
</compile_context>

<pallas_src>
import functools
import random

import jax
import jax.numpy as jnp
from jax.experimental import pallas as pl
from jax.experimental.pallas import tpu as pltpu


def _round_up(x, m):
    return ((x + m - 1) // m) * m


def dynamicnet_kernel(x_ref, w_in_ref, b_in_ref,
                      w_mid_ref, b_mid_ref,
                      w_out_ref, b_out_ref,
                      y_ref, *, n_mid):
    """One batch tile of the DynamicNet forward.

    x is f32 (cast to bf16 here, on the VPU); weights are pre-padded bf16,
    biases f32.  All matmuls accumulate in f32 on the MXU.  The shared middle
    layer is statically unrolled (n_mid in {0..3}).
    """
    x = x_ref[...].astype(w_in_ref.dtype)

    # h_relu = relu(input_linear(x))
    h = jnp.dot(x, w_in_ref[...], preferred_element_type=jnp.float32)
    h = jnp.maximum(h + b_in_ref[...], 0.0)

    # Shared middle layer applied n_mid times.  Weight/bias loads hoisted out
    # of the unrolled loop (JAX does not CSE broadcast_in_dim).
    if n_mid > 0:
        w_mid = w_mid_ref[...]
        b_mid = b_mid_ref[...]
        for _ in range(n_mid):
            h = jnp.dot(h.astype(w_mid.dtype), w_mid,
                        preferred_element_type=jnp.float32)
            h = jnp.maximum(h + b_mid, 0.0)

    # y_pred = output_linear(h_relu)   (only the final projection is live)
    y_ref[...] = (jnp.dot(h.astype(w_out_ref.dtype), w_out_ref[...],
                          preferred_element_type=jnp.float32)
                  + b_out_ref[...])


def prepare_params(w_in, b_in, w_mid, b_mid, w_out, b_out):
    """Pad feature dims to lane width (128) and cast weights to bf16 ONCE.

    Run this at parameter-init time; the per-forward path then contains only
    the Pallas kernel.  Zero padding is numerically sound: padded bias entries
    are 0 and ReLU(0)=0, so padded hidden columns stay zero through the whole
    chain and are sliced off at the end.  The contraction dim nIn is left
    unpadded (the x block spans the full dim inside the kernel).
    Weights are stored [in, out] (transposed vs. PyTorch); biases as [1, F].
    """
    nIn, nH = w_in.shape
    nOut = w_out.shape[1]
    nH_p = _round_up(nH, 128)
    nOut_p = _round_up(nOut, 128)

    def pad2(a, rows, cols):
        return jnp.pad(a, ((0, rows - a.shape[0]), (0, cols - a.shape[1])))

    return dict(
        w_in=pad2(w_in, nIn, nH_p).astype(jnp.bfloat16),
        b_in=pad2(b_in, 1, nH_p).astype(jnp.float32),
        w_mid=pad2(w_mid, nH_p, nH_p).astype(jnp.bfloat16),
        b_mid=pad2(b_mid, 1, nH_p).astype(jnp.float32),
        w_out=pad2(w_out, nH_p, nOut_p).astype(jnp.bfloat16),
        b_out=pad2(b_out, 1, nOut_p).astype(jnp.float32),
        n_in=nIn,
        n_out=nOut,
    )


def dynamic_net_forward(x, params, n_middle, *, max_single_tile=1024):
    """Forward pass with pre-padded/cast params (see prepare_params)."""
    B, nIn = x.shape
    assert nIn == params["w_in"].shape[0]
    nOut_p = params["w_out"].shape[1]
    nOut = params["n_out"]

    if B <= max_single_tile:
        # One full-batch step: fills the MXU's M dim, no per-step overhead,
        # and the x block spans the full batch dim so no padding is needed.
        tile_b, B_p = B, B
    else:
        # Large batch: 256-row tiles (v6e/v7x MXU height), batch-tiled grid.
        tile_b = 256
        B_p = _round_up(B, tile_b)
        if B_p != B:
            x = jnp.pad(x, ((0, B_p - B), (0, 0)))
    grid = (B_p // tile_b,)
    # Shard across TensorCores only when each core still gets full MXU rows;
    # a single-step grid stays on one TC (no duplicated weight DMA).
    semantics = ("parallel",) if grid[0] > 1 else ("arbitrary",)

    kernel = functools.partial(dynamicnet_kernel, n_mid=int(n_middle))

    # Weights/biases: constant index_map -> VMEM-resident across the batch axis.
    def resident(a):
        return pl.BlockSpec(a.shape, lambda i: (0,) * a.ndim)

    y_p = pl.pallas_call(
        kernel,
        out_shape=jax.ShapeDtypeStruct((B_p, nOut_p), jnp.float32),
        grid_spec=pltpu.PrefetchScalarGridSpec(
            num_scalar_prefetch=0,
            grid=grid,
            in_specs=[
                pl.BlockSpec((tile_b, nIn), lambda i: (i, 0)),   # x (raw f32)
                resident(params["w_in"]),
                resident(params["b_in"]),
                resident(params["w_mid"]),
                resident(params["b_mid"]),
                resident(params["w_out"]),
                resident(params["b_out"]),
            ],
            out_specs=pl.BlockSpec((tile_b, nOut_p), lambda i: (i, 0)),
        ),
        compiler_params=pltpu.CompilerParams(dimension_semantics=semantics),
    )(x, params["w_in"], params["b_in"], params["w_mid"], params["b_mid"],
      params["w_out"], params["b_out"])

    return y_p[:B, :nOut]


def _init_linear(key, fan_in, fan_out):
    # PyTorch nn.Linear default init: U(-1/sqrt(fan_in), 1/sqrt(fan_in))
    kw, kb = jax.random.split(key)
    bound = 1.0 / (fan_in ** 0.5)
    w = jax.random.uniform(kw, (fan_in, fan_out), jnp.float32, -bound, bound)
    b = jax.random.uniform(kb, (1, fan_out), jnp.float32, -bound, bound)
    return w, b


if __name__ == "__main__":
    # Shapes consistent with the module: batch_size=64, dim_in=1000; hidden/out small.
    B, nIn, nH, nOut = 64, 1000, 100, 10

    key = jax.random.PRNGKey(0)
    kx, k1, k2, k3 = jax.random.split(key, 4)

    x = jax.random.normal(kx, (B, nIn), jnp.float32)
    w_in, b_in = _init_linear(k1, nIn, nH)
    w_mid, b_mid = _init_linear(k2, nH, nH)
    w_out, b_out = _init_linear(k3, nH, nOut)

    # Pad/cast parameters ONCE (hoisted off the per-call path).
    params = prepare_params(w_in, b_in, w_mid, b_mid, w_out, b_out)
    params = {k: (jax.block_until_ready(v) if isinstance(v, jax.Array) else v)
              for k, v in params.items()}

    # Dynamic depth: same semantics as `random.randint(0, 3)`, drawn host-side
    # with a fixed seed and baked statically into the kernel (one compiled
    # variant per depth value; only 4 exist).
    random.seed(0)
    n_middle = random.randint(0, 3)

    y = dynamic_net_forward(x, params, n_middle)
    y = jax.block_until_ready(y)

    # Reference with the same bf16-matmul / f32-accumulate pattern.
    def bf16_dot(a, w):
        return jax.lax.dot(a.astype(jnp.bfloat16), w.astype(jnp.bfloat16),
                           preferred_element_type=jnp.float32)

    h_ref = jnp.maximum(bf16_dot(x, w_in) + b_in, 0.0)
    for _ in range(n_middle):
        h_ref = jnp.maximum(bf16_dot(h_ref, w_mid) + b_mid, 0.0)
    y_ref = bf16_dot(h_ref, w_out) + b_out
    assert jnp.allclose(y, y_ref, atol=1e-2, rtol=1e-2), \
        float(jnp.max(jnp.abs(y - y_ref)))

    # Looser sanity check against a pure-f32 reference (bf16 quantization noise).
    h32 = jnp.maximum(x @ w_in + b_in, 0.0)
    for _ in range(n_middle):
        h32 = jnp.maximum(h32 @ w_mid + b_mid, 0.0)
    y32 = h32 @ w_out + b_out
    assert jnp.allclose(y, y32, atol=1e-1, rtol=1e-1)

    print("KERNEL_OK")
</pallas_src>

<mosaic_0001>
module attributes {stable_mosaic.version = 11 : i64} {
  func.func @dynamicnet_kernel(%arg0: i32, %arg1: memref<64x1000xf32, #tpu.memory_space<vmem>>, %arg2: memref<1000x128xbf16, #tpu.memory_space<vmem>>, %arg3: memref<1x128xf32, #tpu.memory_space<vmem>>, %arg4: memref<128x128xbf16, #tpu.memory_space<vmem>>, %arg5: memref<1x128xf32, #tpu.memory_space<vmem>>, %arg6: memref<128x128xbf16, #tpu.memory_space<vmem>>, %arg7: memref<1x128xf32, #tpu.memory_space<vmem>>, %arg8: memref<64x128xf32, #tpu.memory_space<vmem>>) attributes {dimension_semantics = [#tpu.dimension_semantics<arbitrary>], iteration_bounds = array<i64: 1>, scalar_prefetch = 0 : i64, scratch_operands = 0 : i64, tpu.core_type = #tpu.core_type<tc>, window_params = [{transform_indices = @transform_0, window_bounds = array<i64: 64, 1000>}, {pipeline_mode = #tpu.pipeline_mode<synchronous>, transform_indices = @transform_1, window_bounds = array<i64: 1000, 128>}, {pipeline_mode = #tpu.pipeline_mode<synchronous>, transform_indices = @transform_2, window_bounds = array<i64: 1, 128>}, {pipeline_mode = #tpu.pipeline_mode<synchronous>, transform_indices = @transform_3, window_bounds = array<i64: 128, 128>}, {pipeline_mode = #tpu.pipeline_mode<synchronous>, transform_indices = @transform_4, window_bounds = array<i64: 1, 128>}, {pipeline_mode = #tpu.pipeline_mode<synchronous>, transform_indices = @transform_5, window_bounds = array<i64: 128, 128>}, {pipeline_mode = #tpu.pipeline_mode<synchronous>, transform_indices = @transform_6, window_bounds = array<i64: 1, 128>}, {transform_indices = @transform_7, window_bounds = array<i64: 64, 128>}]} {
    %c0 = arith.constant 0 : index
    %c0_0 = arith.constant 0 : index
    %0 = vector.load %arg1[%c0, %c0_0] : memref<64x1000xf32, #tpu.memory_space<vmem>>, vector<64x1000xf32>
    %1 = arith.truncf %0 : vector<64x1000xf32> to vector<64x1000xbf16>
    %c0_1 = arith.constant 0 : index
    %c0_2 = arith.constant 0 : index
    %2 = vector.load %arg2[%c0_1, %c0_2] : memref<1000x128xbf16, #tpu.memory_space<vmem>>, vector<1000x128xbf16>
    %cst = arith.constant dense<0.000000e+00> : vector<64x128xf32>
    %3 = tpu.matmul %1, %2, %cst {dimension_numbers = #tpu.dot_dimension_numbers<[1], [0], [0], [1], [0, 0, 1, 1], [], []>} : vector<64x1000xbf16>, vector<1000x128xbf16>, vector<64x128xf32> -> vector<64x128xf32>
    %c0_3 = arith.constant 0 : index
    %c0_4 = arith.constant 0 : index
    %4 = vector.load %arg3[%c0_3, %c0_4] : memref<1x128xf32, #tpu.memory_space<vmem>>, vector<1x128xf32>
    %5 = vector.broadcast %4 : vector<1x128xf32> to vector<64x128xf32>
    %6 = arith.addf %3, %5 : vector<64x128xf32>
    %cst_5 = arith.constant 0.000000e+00 : f32
    %7 = vector.broadcast %cst_5 : f32 to vector<64x128xf32>
    %8 = arith.maximumf %6, %7 : vector<64x128xf32>
    %c0_6 = arith.constant 0 : index
    %c0_7 = arith.constant 0 : index
    %9 = vector.load %arg4[%c0_6, %c0_7] : memref<128x128xbf16, #tpu.memory_space<vmem>>, vector<128x128xbf16>
    %c0_8 = arith.constant 0 : index
    %c0_9 = arith.constant 0 : index
    %10 = vector.load %arg5[%c0_8, %c0_9] : memref<1x128xf32, #tpu.memory_space<vmem>>, vector<1x128xf32>
    %11 = arith.truncf %8 : vector<64x128xf32> to vector<64x128xbf16>
    %cst_10 = arith.constant dense<0.000000e+00> : vector<64x128xf32>
    %12 = tpu.matmul %11, %9, %cst_10 {dimension_numbers = #tpu.dot_dimension_numbers<[1], [0], [0], [1], [0, 0, 1, 1], [], []>} : vector<64x128xbf16>, vector<128x128xbf16>, vector<64x128xf32> -> vector<64x128xf32>
    %13 = vector.broadcast %10 : vector<1x128xf32> to vector<64x128xf32>
    %14 = arith.addf %12, %13 : vector<64x128xf32>
    %cst_11 = arith.constant 0.000000e+00 : f32
    %15 = vector.broadcast %cst_11 : f32 to vector<64x128xf32>
    %16 = arith.maximumf %14, %15 : vector<64x128xf32>
    %17 = arith.truncf %16 : vector<64x128xf32> to vector<64x128xbf16>
    %cst_12 = arith.constant dense<0.000000e+00> : vector<64x128xf32>
    %18 = tpu.matmul %17, %9, %cst_12 {dimension_numbers = #tpu.dot_dimension_numbers<[1], [0], [0], [1], [0, 0, 1, 1], [], []>} : vector<64x128xbf16>, vector<128x128xbf16>, vector<64x128xf32> -> vector<64x128xf32>
    %19 = vector.broadcast %10 : vector<1x128xf32> to vector<64x128xf32>
    %20 = arith.addf %18, %19 : vector<64x128xf32>
    %cst_13 = arith.constant 0.000000e+00 : f32
    %21 = vector.broadcast %cst_13 : f32 to vector<64x128xf32>
    %22 = arith.maximumf %20, %21 : vector<64x128xf32>
    %23 = arith.truncf %22 : vector<64x128xf32> to vector<64x128xbf16>
    %cst_14 = arith.constant dense<0.000000e+00> : vector<64x128xf32>
    %24 = tpu.matmul %23, %9, %cst_14 {dimension_numbers = #tpu.dot_dimension_numbers<[1], [0], [0], [1], [0, 0, 1, 1], [], []>} : vector<64x128xbf16>, vector<128x128xbf16>, vector<64x128xf32> -> vector<64x128xf32>
    %25 = vector.broadcast %10 : vector<1x128xf32> to vector<64x128xf32>
    %26 = arith.addf %24, %25 : vector<64x128xf32>
    %cst_15 = arith.constant 0.000000e+00 : f32
    %27 = vector.broadcast %cst_15 : f32 to vector<64x128xf32>
    %28 = arith.maximumf %26, %27 : vector<64x128xf32>
    %29 = arith.truncf %28 : vector<64x128xf32> to vector<64x128xbf16>
    %c0_16 = arith.constant 0 : index
    %c0_17 = arith.constant 0 : index
    %30 = vector.load %arg6[%c0_16, %c0_17] : memref<128x128xbf16, #tpu.memory_space<vmem>>, vector<128x128xbf16>
    %cst_18 = arith.constant dense<0.000000e+00> : vector<64x128xf32>
    %31 = tpu.matmul %29, %30, %cst_18 {dimension_numbers = #tpu.dot_dimension_numbers<[1], [0], [0], [1], [0, 0, 1, 1], [], []>} : vector<64x128xbf16>, vector<128x128xbf16>, vector<64x128xf32> -> vector<64x128xf32>
    %c0_19 = arith.constant 0 : index
    %c0_20 = arith.constant 0 : index
    %32 = vector.load %arg7[%c0_19, %c0_20] : memref<1x128xf32, #tpu.memory_space<vmem>>, vector<1x128xf32>
    %33 = vector.broadcast %32 : vector<1x128xf32> to vector<64x128xf32>
    %34 = arith.addf %31, %33 : vector<64x128xf32>
    %c0_21 = arith.constant 0 : index
    %c0_22 = arith.constant 0 : index
    %35 = vector.load %arg8[%c0_21, %c0_22] : memref<64x128xf32, #tpu.memory_space<vmem>>, vector<64x128xf32>
    tpu.vector_store %arg8[%c0_21, %c0_22], %34 {strides = array<i32>} : memref<64x128xf32, #tpu.memory_space<vmem>>, vector<64x128xf32>,
    return
  }
  func.func @transform_0(%arg0: i32) -> (i32, i32) {
    %c0_i32 = arith.constant 0 : i32
    %c0_i32_0 = arith.constant 0 : i32
    return %arg0, %c0_i32 : i32, i32
  }
  func.func @transform_1(%arg0: i32) -> (i32, i32) {
    %c0_i32 = arith.constant 0 : i32
    %c0_i32_0 = arith.constant 0 : i32
    %c0_i32_1 = arith.constant 0 : i32
    return %c0_i32, %c0_i32_0 : i32, i32
  }
  func.func @transform_2(%arg0: i32) -> (i32, i32) {
    %c0_i32 = arith.constant 0 : i32
    %c0_i32_0 = arith.constant 0 : i32
    %c0_i32_1 = arith.constant 0 : i32
    return %c0_i32, %c0_i32_0 : i32, i32
  }
  func.func @transform_3(%arg0: i32) -> (i32, i32) {
    %c0_i32 = arith.constant 0 : i32
    %c0_i32_0 = arith.constant 0 : i32
    %c0_i32_1 = arith.constant 0 : i32
    return %c0_i32, %c0_i32_0 : i32, i32
  }
  func.func @transform_4(%arg0: i32) -> (i32, i32) {
    %c0_i32 = arith.constant 0 : i32
    %c0_i32_0 = arith.constant 0 : i32
    %c0_i32_1 = arith.constant 0 : i32
    return %c0_i32, %c0_i32_0 : i32, i32
  }
  func.func @transform_5(%arg0: i32) -> (i32, i32) {
    %c0_i32 = arith.constant 0 : i32
    %c0_i32_0 = arith.constant 0 : i32
    %c0_i32_1 = arith.constant 0 : i32
    return %c0_i32, %c0_i32_0 : i32, i32
  }
  func.func @transform_6(%arg0: i32) -> (i32, i32) {
    %c0_i32 = arith.constant 0 : i32
    %c0_i32_0 = arith.constant 0 : i32
    %c0_i32_1 = arith.constant 0 : i32
    return %c0_i32, %c0_i32_0 : i32, i32
  }
  func.func @transform_7(%arg0: i32) -> (i32, i32) {
    %c0_i32 = arith.constant 0 : i32
    %c0_i32_0 = arith.constant 0 : i32
    return %arg0, %c0_i32 : i32, i32
  }
}

</mosaic_0001>

<llo_original>
// kernel: tpu_custom_call.1
$region0: #{tpu_custom_call.1}
  #allocation0 [shape = 'u32[]', space=smem, size = 0x4, offset = 0x4, fixed_abs, tag = 'smem constant byte address 0x4 - core index']
  #allocation1 [shape = 'u32[144,128]{1,0:T(1,128)}', space=vmem, size = 0x12000, scoped, tag = 'internal scratch']
  %s0 = inlined_call_operand.hbm [shape: f32[64,1000], index: 0, kind: input, shape index: {}]
  %s1 = inlined_call_operand.hbm [shape: bf16[1000,128], index: 1, kind: input, shape index: {}]
  %s2 = inlined_call_operand.vmem [shape: f32[1,128], index: 2, kind: input, shape index: {}]
  %s3 = inlined_call_operand.hbm [shape: bf16[128,128], index: 3, kind: input, shape index: {}]
  %s4 = inlined_call_operand.vmem [shape: f32[1,128], index: 4, kind: input, shape index: {}]
  %s5 = inlined_call_operand.hbm [shape: bf16[128,128], index: 5, kind: input, shape index: {}]
  %s6 = inlined_call_operand.vmem [shape: f32[1,128], index: 6, kind: input, shape index: {}]
  %s7 = inlined_call_operand.hbm [shape: f32[64,128], index: 7, kind: output, shape index: {}]
  %s8 = sld [smem:[#allocation0]]
  $region54: #{tpu_custom_call.1} parent=0
    _
  %s10 = ssub.s32 1, %s8
  %s11 = scalar_select 0, %s10, %s8
  $region1: #{tpu_custom_call.1} parent=0
    #allocation2 [shape = 'u8[262144]{0}', space=vmem, size = 0x40000, scoped, tag = 'input window, operand 0, single buffered']
    #allocation3 [shape = 's32[1]{0}', space=sflag, size = 0x4, scoped, tag = 'scoped memory for tpu_custom_call.1']
    #allocation4 [shape = 's32[1]{0}', space=sflag, size = 0x4, scoped, tag = 'scoped memory for tpu_custom_call.1']
    #allocation5 [shape = 'u8[256000]{0}', space=vmem, size = 0x3e800, scoped, tag = 'input window, operand 1, single buffered']
    #allocation6 [shape = 's32[1]{0}', space=sflag, size = 0x4, scoped, tag = 'scoped memory for tpu_custom_call.1']
    #allocation7 [shape = 'u8[32768]{0}', space=vmem, size = 0x8000, scoped, tag = 'input window, operand 3, single buffered']
    #allocation8 [shape = 'u8[32768]{0}', space=vmem, size = 0x8000, scoped, tag = 'input window, operand 5, single buffered']
    #allocation9 [shape = 's32[1]{0}', space=sflag, size = 0x4, scoped, tag = 'scoped memory for tpu_custom_call.1']
    #allocation10 [shape = 'u8[32768]{0}', space=vmem, size = 0x8000, scoped, tag = 'output window, operand 0, single buffered']
    %12 = vsyncpa [#allocation3], 0
    %13 = vsyncpa [#allocation6], 0
    %14 = vsyncpa [#allocation9], 0
    %15 = vsyncpa [#allocation4], 0
    // Predicated region
    $region2: #{tpu_custom_call.1} parent=1 // pred_check
      _
    $region3: #{tpu_custom_call.1} parent=1 // pred_check_branch
      %17 = sbr.rel (0) target = $region5
    $region4: #{tpu_custom_call.1} parent=1 // pred_region
      %s19 = ssub.s32 8192, 8192
      %20 = vsyncadd [#allocation3], %s19
      %s21 = sshll.u32 [#allocation2], 4
      %s22 = int_to_ptr.vmem [resolvable:$true] %s21
      %27 = dma.hbm_to_vmem [thread:$0]  %s0, 8192, %s22, [#allocation3], 1024, 1024, 64
    $region5: #{tpu_custom_call.1} parent=1 // pred_fallthru
      _
    // Predicated region
    $region6: #{tpu_custom_call.1} parent=1 // pred_check
      _
    $region7: #{tpu_custom_call.1} parent=1 // pred_check_branch
      %29 = sbr.rel (0) target = $region9
    $region8: #{tpu_custom_call.1} parent=1 // pred_region
      %s31 = ssub.s32 8000, 8000
      %32 = vsyncadd [#allocation6], %s31
      %s33 = sshll.u32 [#allocation5], 4
      %s34 = int_to_ptr.vmem [resolvable:$true] %s33
      %39 = dma.hbm_to_vmem [thread:$0]  %s1, 8000, %s34, [#allocation6], 64, 64, 4
    $region9: #{tpu_custom_call.1} parent=1 // pred_fallthru
      _
    // Predicated region
    $region10: #{tpu_custom_call.1} parent=1 // pred_check
      _
    $region11: #{tpu_custom_call.1} parent=1 // pred_check_branch
      %41 = sbr.rel (0) target = $region13
    $region12: #{tpu_custom_call.1} parent=1 // pred_region
      _
    $region13: #{tpu_custom_call.1} parent=1 // pred_fallthru
      _
    // Predicated region
    $region14: #{tpu_custom_call.1} parent=1 // pred_check
      _
    $region15: #{tpu_custom_call.1} parent=1 // pred_check_branch
      %43 = sbr.rel (0) target = $region17
    $region16: #{tpu_custom_call.1} parent=1 // pred_region
      %s45 = ssub.s32 1024, 1024
      %46 = vsyncadd [#allocation6], %s45
      %s47 = sshll.u32 [#allocation7], 4
      %s48 = int_to_ptr.vmem [resolvable:$true] %s47
      %53 = dma.hbm_to_vmem [thread:$0]  %s3, 1024, %s48, [#allocation6], 64, 64, 4
    $region17: #{tpu_custom_call.1} parent=1 // pred_fallthru
      _
    // Predicated region
    $region18: #{tpu_custom_call.1} parent=1 // pred_check
      _
    $region19: #{tpu_custom_call.1} parent=1 // pred_check_branch
      %55 = sbr.rel (0) target = $region21
    $region20: #{tpu_custom_call.1} parent=1 // pred_region
      _
    $region21: #{tpu_custom_call.1} parent=1 // pred_fallthru
      _
    // Predicated region
    $region22: #{tpu_custom_call.1} parent=1 // pred_check
      _
    $region23: #{tpu_custom_call.1} parent=1 // pred_check_branch
      %57 = sbr.rel (0) target = $region25
    $region24: #{tpu_custom_call.1} parent=1 // pred_region
      %s59 = ssub.s32 1024, 1024
      %60 = vsyncadd [#allocation9], %s59
      %s61 = sshll.u32 [#allocation8], 4
      %s62 = int_to_ptr.vmem [resolvable:$true] %s61
      %67 = dma.hbm_to_vmem [thread:$0]  %s5, 1024, %s62, [#allocation9], 64, 64, 4
    $region25: #{tpu_custom_call.1} parent=1 // pred_fallthru
      _
    // Predicated region
    $region26: #{tpu_custom_call.1} parent=1 // pred_check
      _
    $region27: #{tpu_custom_call.1} parent=1 // pred_check_branch
      %69 = sbr.rel (0) target = $region29
    $region28: #{tpu_custom_call.1} parent=1 // pred_region
      _
    $region29: #{tpu_custom_call.1} parent=1 // pred_fallthru
      _
    // Predicated region
    $region30: #{tpu_custom_call.1} parent=1 // pred_check
      _
    $region31: #{tpu_custom_call.1} parent=1 // pred_check_branch
      %71 = sbr.rel (0) target = $region33
    $region32: #{tpu_custom_call.1} parent=1 // pred_region
      %72 = dma.done [#allocation3], 8192
    $region33: #{tpu_custom_call.1} parent=1 // pred_fallthru
      _
    // Predicated region
    $region34: #{tpu_custom_call.1} parent=1 // pred_check
      _
    $region35: #{tpu_custom_call.1} parent=1 // pred_check_branch
      %74 = sbr.rel (0) target = $region37
    $region36: #{tpu_custom_call.1} parent=1 // pred_region
      %75 = dma.done [#allocation6], 8000
    $region37: #{tpu_custom_call.1} parent=1 // pred_fallthru
      _
    // Predicated region
    $region38: #{tpu_custom_call.1} parent=1 // pred_check
      _
    $region39: #{tpu_custom_call.1} parent=1 // pred_check_branch
      %77 = sbr.rel (0) target = $region41
    $region40: #{tpu_custom_call.1} parent=1 // pred_region
      %78 = dma.done [#allocation6], 1024
    $region41: #{tpu_custom_call.1} parent=1 // pred_fallthru
      _
    // Predicated region
    $region42: #{tpu_custom_call.1} parent=1 // pred_check
      _
    $region43: #{tpu_custom_call.1} parent=1 // pred_check_branch
      %80 = sbr.rel (0) target = $region45
    $region44: #{tpu_custom_call.1} parent=1 // pred_region
      %81 = dma.done [#allocation9], 1024
    $region45: #{tpu_custom_call.1} parent=1 // pred_fallthru
      _
    %v83 = vld [vmem:[#allocation2] sm:$0xff]
    %v84 = vld [vmem:[#allocation2 + $0x8] sm:$0xff]
    %v85 = vld [vmem:[#allocation2 + $0x10] sm:$0xff]
    %v86 = vld [vmem:[#allocation2 + $0x18] sm:$0xff]
    %v87 = vld [vmem:[#allocation2 + $0x20] sm:$0xff]
    %v88 = vld [vmem:[#allocation2 + $0x28] sm:$0xff]
    %v89 = vld [vmem:[#allocation2 + $0x30] sm:$0xff]
    %v90 = vld [vmem:[#allocation2 + $0x38] sm:$0xff]
    %v91 = vld [vmem:[#allocation2 + $0x40] sm:$0xff]
    %v92 = vld [vmem:[#allocation2 + $0x48] sm:$0xff]
    %v93 = vld [vmem:[#allocation2 + $0x50] sm:$0xff]
    %v94 = vld [vmem:[#allocation2 + $0x58] sm:$0xff]
    %v95 = vld [vmem:[#allocation2 + $0x60] sm:$0xff]
    %v96 = vld [vmem:[#allocation2 + $0x68] sm:$0xff]
    %v97 = vld [vmem:[#allocation2 + $0x70] sm:$0xff]
    %v98 = vld [vmem:[#allocation2 + $0x78] sm:$0xff]
    %v99 = vld [vmem:[#allocation2 + $0x80] sm:$0xff]
    %v100 = vld [vmem:[#allocation2 + $0x88] sm:$0xff]
    %v101 = vld [vmem:[#allocation2 + $0x90] sm:$0xff]
    %v102 = vld [vmem:[#allocation2 + $0x98] sm:$0xff]
    %v103 = vld [vmem:[#allocation2 + $0xa0] sm:$0xff]
    %v104 = vld [vmem:[#allocation2 + $0xa8] sm:$0xff]
    %v105 = vld [vmem:[#allocation2 + $0xb0] sm:$0xff]
    %v106 = vld [vmem:[#allocation2 + $0xb8] sm:$0xff]
    %v107 = vld [vmem:[#allocation2 + $0xc0] sm:$0xff]
    %v108 = vld [vmem:[#allocation2 + $0xc8] sm:$0xff]
    %v109 = vld [vmem:[#allocation2 + $0xd0] sm:$0xff]
    %v110 = vld [vmem:[#allocation2 + $0xd8] sm:$0xff]
    %v111 = vld [vmem:[#allocation2 + $0xe0] sm:$0xff]
    %v112 = vld [vmem:[#allocation2 + $0xe8] sm:$0xff]
    %v113 = vld [vmem:[#allocation2 + $0xf0] sm:$0xff]
    %v114 = vld [vmem:[#allocation2 + $0xf8] sm:$0xff]
    %v115 = vld [vmem:[#allocation2 + $0x100] sm:$0xff]
    %v116 = vld [vmem:[#allocation2 + $0x108] sm:$0xff]
    %v117 = vld [vmem:[#allocation2 + $0x110] sm:$0xff]
    %v118 = vld [vmem:[#allocation2 + $0x118] sm:$0xff]
    %v119 = vld [vmem:[#allocation2 + $0x120] sm:$0xff]
    %v120 = vld [vmem:[#allocation2 + $0x128] sm:$0xff]
    %v121 = vld [vmem:[#allocation2 + $0x130] sm:$0xff]
    %v122 = vld [vmem:[#allocation2 + $0x138] sm:$0xff]
    %v123 = vld [vmem:[#allocation2 + $0x140] sm:$0xff]
    %v124 = vld [vmem:[#allocation2 + $0x148] sm:$0xff]
    %v125 = vld [vmem:[#allocation2 + $0x150] sm:$0xff]
    %v126 = vld [vmem:[#allocation2 + $0x158] sm:$0xff]
    %v127 = vld [vmem:[#allocation2 + $0x160] sm:$0xff]
    %v128 = vld [vmem:[#allocation2 + $0x168] sm:$0xff]
    %v129 = vld [vmem:[#allocation2 + $0x170] sm:$0xff]
    %v130 = vld [vmem:[#allocation2 + $0x178] sm:$0xff]
    %v131 = vld [vmem:[#allocation2 + $0x180] sm:$0xff]
    %v132 = vld [vmem:[#allocation2 + $0x188] sm:$0xff]
    %v133 = vld [vmem:[#allocation2 + $0x190] sm:$0xff]
    %v134 = vld [vmem:[#allocation2 + $0x198] sm:$0xff]
    %v135 = vld [vmem:[#allocation2 + $0x1a0] sm:$0xff]
    %v136 = vld [vmem:[#allocation2 + $0x1a8] sm:$0xff]
    %v137 = vld [vmem:[#allocation2 + $0x1b0] sm:$0xff]
    %v138 = vld [vmem:[#allocation2 + $0x1b8] sm:$0xff]
    %v139 = vld [vmem:[#allocation2 + $0x1c0] sm:$0xff]
    %v140 = vld [vmem:[#allocation2 + $0x1c8] sm:$0xff]
    %v141 = vld [vmem:[#allocation2 + $0x1d0] sm:$0xff]
    %v142 = vld [vmem:[#allocation2 + $0x1d8] sm:$0xff]
    %v143 = vld [vmem:[#allocation2 + $0x1e0] sm:$0xff]
    %v144 = vld [vmem:[#allocation2 + $0x1e8] sm:$0xff]
    %v145 = vld [vmem:[#allocation2 + $0x1f0] sm:$0xff]
    %v146 = vld [vmem:[#allocation2 + $0x1f8] sm:$0xff]
    %v147 = vpack.c.bf16 %v91, %v83
    %v148 = vpack.c.bf16 %v92, %v84
    %v149 = vpack.c.bf16 %v93, %v85
    %v150 = vpack.c.bf16 %v94, %v86
    %v151 = vpack.c.bf16 %v95, %v87
    %v152 = vpack.c.bf16 %v96, %v88
    %v153 = vpack.c.bf16 %v97, %v89
    %v154 = vpack.c.bf16 %v98, %v90
    %v155 = vpack.c.bf16 %v107, %v99
    %v156 = vpack.c.bf16 %v108, %v100
    %v157 = vpack.c.bf16 %v109, %v101
    %v158 = vpack.c.bf16 %v110, %v102
    %v159 = vpack.c.bf16 %v111, %v103
    %v160 = vpack.c.bf16 %v112, %v104
    %v161 = vpack.c.bf16 %v113, %v105
    %v162 = vpack.c.bf16 %v114, %v106
    %v163 = vpack.c.bf16 %v123, %v115
    %v164 = vpack.c.bf16 %v124, %v116
    %v165 = vpack.c.bf16 %v125, %v117
    %v166 = vpack.c.bf16 %v126, %v118
    %v167 = vpack.c.bf16 %v127, %v119
    %v168 = vpack.c.bf16 %v128, %v120
    %v169 = vpack.c.bf16 %v129, %v121
    %v170 = vpack.c.bf16 %v130, %v122
    %v171 = vpack.c.bf16 %v139, %v131
    %v172 = vpack.c.bf16 %v140, %v132
    %v173 = vpack.c.bf16 %v141, %v133
    %v174 = vpack.c.bf16 %v142, %v134
    %v175 = vpack.c.bf16 %v143, %v135
    %v176 = vpack.c.bf16 %v144, %v136
    %v177 = vpack.c.bf16 %v145, %v137
    %v178 = vpack.c.bf16 %v146, %v138
    %v179 = vld [vmem:[#allocation5] sm:$0xf]
    %v180 = vld [vmem:[#allocation5 + $0x4] sm:$0xf]
    %v181 = vld [vmem:[#allocation5 + $0x8] sm:$0xf]
    %v182 = vld [vmem:[#allocation5 + $0xc] sm:$0xf]
    %v183 = vld [vmem:[#allocation5 + $0x10] sm:$0xf]
    %v184 = vld [vmem:[#allocation5 + $0x14] sm:$0xf]
    %v185 = vld [vmem:[#allocation5 + $0x18] sm:$0xf]
    %v186 = vld [vmem:[#allocation5 + $0x1c] sm:$0xf]
    %v187 = vld [vmem:[#allocation5 + $0x20] sm:$0xf]
    %v188 = vld [vmem:[#allocation5 + $0x24] sm:$0xf]
    %v189 = vld [vmem:[#allocation5 + $0x28] sm:$0xf]
    %v190 = vld [vmem:[#allocation5 + $0x2c] sm:$0xf]
    %v191 = vld [vmem:[#allocation5 + $0x30] sm:$0xf]
    %v192 = vld [vmem:[#allocation5 + $0x34] sm:$0xf]
    %v193 = vld [vmem:[#allocation5 + $0x38] sm:$0xf]
    %v194 = vld [vmem:[#allocation5 + $0x3c] sm:$0xf]
    %v195 = vld [vmem:[#allocation5 + $0x40] sm:$0xf]
    %v196 = vld [vmem:[#allocation5 + $0x44] sm:$0xf]
    %v197 = vld [vmem:[#allocation5 + $0x48] sm:$0xf]
    %v198 = vld [vmem:[#allocation5 + $0x4c] sm:$0xf]
    %v199 = vld [vmem:[#allocation5 + $0x50] sm:$0xf]
    %v200 = vld [vmem:[#allocation5 + $0x54] sm:$0xf]
    %v201 = vld [vmem:[#allocation5 + $0x58] sm:$0xf]
    %v202 = vld [vmem:[#allocation5 + $0x5c] sm:$0xf]
    %v203 = vld [vmem:[#allocation5 + $0x60] sm:$0xf]
    %v204 = vld [vmem:[#allocation5 + $0x64] sm:$0xf]
    %v205 = vld [vmem:[#allocation5 + $0x68] sm:$0xf]
    %v206 = vld [vmem:[#allocation5 + $0x6c] sm:$0xf]
    %v207 = vld [vmem:[#allocation5 + $0x70] sm:$0xf]
    %v208 = vld [vmem:[#allocation5 + $0x74] sm:$0xf]
    %v209 = vld [vmem:[#allocation5 + $0x78] sm:$0xf]
    %v210 = vld [vmem:[#allocation5 + $0x7c] sm:$0xf]
    %v211 = vld [vmem:[#allocation5 + $0x80] sm:$0xf]
    %v212 = vld [vmem:[#allocation5 + $0x84] sm:$0xf]
    %v213 = vld [vmem:[#allocation5 + $0x88] sm:$0xf]
    %v214 = vld [vmem:[#allocation5 + $0x8c] sm:$0xf]
    %v215 = vld [vmem:[#allocation5 + $0x90] sm:$0xf]
    %v216 = vld [vmem:[#allocation5 + $0x94] sm:$0xf]
    %v217 = vld [vmem:[#allocation5 + $0x98] sm:$0xf]
    %v218 = vld [vmem:[#allocation5 + $0x9c] sm:$0xf]
    %v219 = vld [vmem:[#allocation5 + $0xa0] sm:$0xf]
    %v220 = vld [vmem:[#allocation5 + $0xa4] sm:$0xf]
    %v221 = vld [vmem:[#allocation5 + $0xa8] sm:$0xf]
    %v222 = vld [vmem:[#allocation5 + $0xac] sm:$0xf]
    %v223 = vld [vmem:[#allocation5 + $0xb0] sm:$0xf]
    %v224 = vld [vmem:[#allocation5 + $0xb4] sm:$0xf]
    %v225 = vld [vmem:[#allocation5 + $0xb8] sm:$0xf]
    %v226 = vld [vmem:[#allocation5 + $0xbc] sm:$0xf]
    %v227 = vld [vmem:[#allocation5 + $0xc0] sm:$0xf]
    %v228 = vld [vmem:[#allocation5 + $0xc4] sm:$0xf]
    %v229 = vld [vmem:[#allocation5 + $0xc8] sm:$0xf]
    %v230 = vld [vmem:[#allocation5 + $0xcc] sm:$0xf]
    %v231 = vld [vmem:[#allocation5 + $0xd0] sm:$0xf]
    %v232 = vld [vmem:[#allocation5 + $0xd4] sm:$0xf]
    %v233 = vld [vmem:[#allocation5 + $0xd8] sm:$0xf]
    %v234 = vld [vmem:[#allocation5 + $0xdc] sm:$0xf]
    %v235 = vld [vmem:[#allocation5 + $0xe0] sm:$0xf]
    %v236 = vld [vmem:[#allocation5 + $0xe4] sm:$0xf]
    %v237 = vld [vmem:[#allocation5 + $0xe8] sm:$0xf]
    %v238 = vld [vmem:[#allocation5 + $0xec] sm:$0xf]
    %v239 = vld [vmem:[#allocation5 + $0xf0] sm:$0xf]
    %v240 = vld [vmem:[#allocation5 + $0xf4] sm:$0xf]
    %v241 = vld [vmem:[#allocation5 + $0xf8] sm:$0xf]
    %v242 = vld [vmem:[#allocation5 + $0xfc] sm:$0xf]
    %v243 = vld [vmem:[#allocation5 + $0x100] sm:$0xf]
    %v244 = vld [vmem:[#allocation5 + $0x104] sm:$0xf]
    %v245 = vld [vmem:[#allocation5 + $0x108] sm:$0xf]
    %v246 = vld [vmem:[#allocation5 + $0x10c] sm:$0xf]
    %v247 = vld [vmem:[#allocation5 + $0x110] sm:$0xf]
    %v248 = vld [vmem:[#allocation5 + $0x114] sm:$0xf]
    %v249 = vld [vmem:[#allocation5 + $0x118] sm:$0xf]
    %v250 = vld [vmem:[#allocation5 + $0x11c] sm:$0xf]
    %v251 = vld [vmem:[#allocation5 + $0x120] sm:$0xf]
    %v252 = vld [vmem:[#allocation5 + $0x124] sm:$0xf]
    %v253 = vld [vmem:[#allocation5 + $0x128] sm:$0xf]
    %v254 = vld [vmem:[#allocation5 + $0x12c] sm:$0xf]
    %v255 = vld [vmem:[#allocation5 + $0x130] sm:$0xf]
    %v256 = vld [vmem:[#allocation5 + $0x134] sm:$0xf]
    %v257 = vld [vmem:[#allocation5 + $0x138] sm:$0xf]
    %v258 = vld [vmem:[#allocation5 + $0x13c] sm:$0xf]
    %v259 = vld [vmem:[#allocation5 + $0x140] sm:$0xf]
    %v260 = vld [vmem:[#allocation5 + $0x144] sm:$0xf]
    %v261 = vld [vmem:[#allocation5 + $0x148] sm:$0xf]
    %v262 = vld [vmem:[#allocation5 + $0x14c] sm:$0xf]
    %v263 = vld [vmem:[#allocation5 + $0x150] sm:$0xf]
    %v264 = vld [vmem:[#allocation5 + $0x154] sm:$0xf]
    %v265 = vld [vmem:[#allocation5 + $0x158] sm:$0xf]
    %v266 = vld [vmem:[#allocation5 + $0x15c] sm:$0xf]
    %v267 = vld [vmem:[#allocation5 + $0x160] sm:$0xf]
    %v268 = vld [vmem:[#allocation5 + $0x164] sm:$0xf]
    %v269 = vld [vmem:[#allocation5 + $0x168] sm:$0xf]
    %v270 = vld [vmem:[#allocation5 + $0x16c] sm:$0xf]
    %v271 = vld [vmem:[#allocation5 + $0x170] sm:$0xf]
    %v272 = vld [vmem:[#allocation5 + $0x174] sm:$0xf]
    %v273 = vld [vmem:[#allocation5 + $0x178] sm:$0xf]
    %v274 = vld [vmem:[#allocation5 + $0x17c] sm:$0xf]
    %v275 = vld [vmem:[#allocation5 + $0x180] sm:$0xf]
    %v276 = vld [vmem:[#allocation5 + $0x184] sm:$0xf]
    %v277 = vld [vmem:[#allocation5 + $0x188] sm:$0xf]
    %v278 = vld [vmem:[#allocation5 + $0x18c] sm:$0xf]
    %v279 = vld [vmem:[#allocation5 + $0x190] sm:$0xf]
    %v280 = vld [vmem:[#allocation5 + $0x194] sm:$0xf]
    %v281 = vld [vmem:[#allocation5 + $0x198] sm:$0xf]
    %v282 = vld [vmem:[#allocation5 + $0x19c] sm:$0xf]
    %v283 = vld [vmem:[#allocation5 + $0x1a0] sm:$0xf]
    %v284 = vld [vmem:[#allocation5 + $0x1a4] sm:$0xf]
    %v285 = vld [vmem:[#allocation5 + $0x1a8] sm:$0xf]
    %v286 = vld [vmem:[#allocation5 + $0x1ac] sm:$0xf]
    %v287 = vld [vmem:[#allocation5 + $0x1b0] sm:$0xf]
    %v288 = vld [vmem:[#allocation5 + $0x1b4] sm:$0xf]
    %v289 = vld [vmem:[#allocation5 + $0x1b8] sm:$0xf]
    %v290 = vld [vmem:[#allocation5 + $0x1bc] sm:$0xf]
    %v291 = vld [vmem:[#allocation5 + $0x1c0] sm:$0xf]
    %v292 = vld [vmem:[#allocation5 + $0x1c4] sm:$0xf]
    %v293 = vld [vmem:[#allocation5 + $0x1c8] sm:$0xf]
    %v294 = vld [vmem:[#allocation5 + $0x1cc] sm:$0xf]
    %v295 = vld [vmem:[#allocation5 + $0x1d0] sm:$0xf]
    %v296 = vld [vmem:[#allocation5 + $0x1d4] sm:$0xf]
    %v297 = vld [vmem:[#allocation5 + $0x1d8] sm:$0xf]
    %v298 = vld [vmem:[#allocation5 + $0x1dc] sm:$0xf]
    %v299 = vld [vmem:[#allocation5 + $0x1e0] sm:$0xf]
    %v300 = vld [vmem:[#allocation5 + $0x1e4] sm:$0xf]
    %v301 = vld [vmem:[#allocation5 + $0x1e8] sm:$0xf]
    %v302 = vld [vmem:[#allocation5 + $0x1ec] sm:$0xf]
    %v303 = vld [vmem:[#allocation5 + $0x1f0] sm:$0xf]
    %v304 = vld [vmem:[%s2] sm:$0x1]
    %v306 = vlaneseq
    %v307 = vshrl.u32 %v306, 7
    %v308 = vsub.s32 0, %v307
    %v309 = vrot.slane %v304, %v308
    %v436 = vunpack.c.l.b16 %v179
    %v437 = vunpack.c.l.b16 %v180
    %v438 = vunpack.c.l.b16 %v181
    %v439 = vunpack.c.l.b16 %v182
    %v440 = vunpack.c.l.b16 %v183
    %v441 = vunpack.c.l.b16 %v184
    %v442 = vunpack.c.l.b16 %v185
    %v443 = vunpack.c.l.b16 %v186
    %v444 = vunpack.c.l.b16 %v187
    %v445 = vunpack.c.l.b16 %v188
    %v446 = vunpack.c.l.b16 %v189
    %v447 = vunpack.c.l.b16 %v190
    %v448 = vunpack.c.l.b16 %v191
    %v449 = vunpack.c.l.b16 %v192
    %v450 = vunpack.c.l.b16 %v193
    %v451 = vunpack.c.l.b16 %v194
    %v452 = vunpack.c.l.b16 %v195
    %v453 = vunpack.c.l.b16 %v196
    %v454 = vunpack.c.l.b16 %v197
    %v455 = vunpack.c.l.b16 %v198
    %v456 = vunpack.c.l.b16 %v199
    %v457 = vunpack.c.l.b16 %v200
    %v458 = vunpack.c.l.b16 %v201
    %v459 = vunpack.c.l.b16 %v202
    %v460 = vunpack.c.l.b16 %v203
    %v461 = vunpack.c.l.b16 %v204
    %v462 = vunpack.c.l.b16 %v205
    %v463 = vunpack.c.l.b16 %v206
    %v464 = vunpack.c.l.b16 %v207
    %v465 = vunpack.c.l.b16 %v208
    %v466 = vunpack.c.l.b16 %v209
    %v467 = vunpack.c.l.b16 %v210
    %v468 = vunpack.c.l.b16 %v211
    %v469 = vunpack.c.l.b16 %v212
    %v470 = vunpack.c.l.b16 %v213
    %v471 = vunpack.c.l.b16 %v214
    %v472 = vunpack.c.l.b16 %v215
    %v473 = vunpack.c.l.b16 %v216
    %v474 = vunpack.c.l.b16 %v217
    %v475 = vunpack.c.l.b16 %v218
    %v476 = vunpack.c.l.b16 %v219
    %v477 = vunpack.c.l.b16 %v220
    %v478 = vunpack.c.l.b16 %v221
    %v479 = vunpack.c.l.b16 %v222
    %v480 = vunpack.c.l.b16 %v223
    %v481 = vunpack.c.l.b16 %v224
    %v482 = vunpack.c.l.b16 %v225
    %v483 = vunpack.c.l.b16 %v226
    %v484 = vunpack.c.l.b16 %v227
    %v485 = vunpack.c.l.b16 %v228
    %v486 = vunpack.c.l.b16 %v229
    %v487 = vunpack.c.l.b16 %v230
    %v488 = vunpack.c.l.b16 %v231
    %v489 = vunpack.c.l.b16 %v232
    %v490 = vunpack.c.l.b16 %v233
    %v491 = vunpack.c.l.b16 %v234
    %v492 = vunpack.c.l.b16 %v235
    %v493 = vunpack.c.l.b16 %v236
    %v494 = vunpack.c.l.b16 %v237
    %v495 = vunpack.c.l.b16 %v238
    %v496 = vunpack.c.l.b16 %v239
    %v497 = vunpack.c.l.b16 %v240
    %v498 = vunpack.c.l.b16 %v241
    %v499 = vunpack.c.l.b16 %v242
    %v500 = vunpack.c.l.b16 %v243
    %v501 = vunpack.c.l.b16 %v244
    %v502 = vunpack.c.l.b16 %v245
    %v503 = vunpack.c.l.b16 %v246
    %v504 = vunpack.c.l.b16 %v247
    %v505 = vunpack.c.l.b16 %v248
    %v506 = vunpack.c.l.b16 %v249
    %v507 = vunpack.c.l.b16 %v250
    %v508 = vunpack.c.l.b16 %v251
    %v509 = vunpack.c.l.b16 %v252
    %v510 = vunpack.c.l.b16 %v253
    %v511 = vunpack.c.l.b16 %v254
    %v512 = vunpack.c.l.b16 %v255
    %v513 = vunpack.c.l.b16 %v256
    %v514 = vunpack.c.l.b16 %v257
    %v515 = vunpack.c.l.b16 %v258
    %v516 = vunpack.c.l.b16 %v259
    %v517 = vunpack.c.l.b16 %v260
    %v518 = vunpack.c.l.b16 %v261
    %v519 = vunpack.c.l.b16 %v262
    %v520 = vunpack.c.l.b16 %v263
    %v521 = vunpack.c.l.b16 %v264
    %v522 = vunpack.c.l.b16 %v265
    %v523 = vunpack.c.l.b16 %v266
    %v524 = vunpack.c.l.b16 %v267
    %v525 = vunpack.c.l.b16 %v268
    %v526 = vunpack.c.l.b16 %v269
    %v527 = vunpack.c.l.b16 %v270
    %v528 = vunpack.c.l.b16 %v271
    %v529 = vunpack.c.l.b16 %v272
    %v530 = vunpack.c.l.b16 %v273
    %v531 = vunpack.c.l.b16 %v274
    %v532 = vunpack.c.l.b16 %v275
    %v533 = vunpack.c.l.b16 %v276
    %v534 = vunpack.c.l.b16 %v277
    %v535 = vunpack.c.l.b16 %v278
    %v536 = vunpack.c.l.b16 %v279
    %v537 = vunpack.c.l.b16 %v280
    %v538 = vunpack.c.l.b16 %v281
    %v539 = vunpack.c.l.b16 %v282
    %v540 = vunpack.c.l.b16 %v283
    %v541 = vunpack.c.l.b16 %v284
    %v542 = vunpack.c.l.b16 %v285
    %v543 = vunpack.c.l.b16 %v286
    %v544 = vunpack.c.l.b16 %v287
    %v545 = vunpack.c.l.b16 %v288
    %v546 = vunpack.c.l.b16 %v289
    %v547 = vunpack.c.l.b16 %v290
    %v548 = vunpack.c.l.b16 %v291
    %v549 = vunpack.c.l.b16 %v292
    %v550 = vunpack.c.l.b16 %v293
    %v551 = vunpack.c.l.b16 %v294
    %v552 = vunpack.c.l.b16 %v295
    %v553 = vunpack.c.l.b16 %v296
    %v554 = vunpack.c.l.b16 %v297
    %v555 = vunpack.c.l.b16 %v298
    %v556 = vunpack.c.l.b16 %v299
    %v557 = vunpack.c.l.b16 %v300
    %v558 = vunpack.c.l.b16 %v301
    %v559 = vunpack.c.l.b16 %v302
    %v560 = vunpack.c.l.b16 %v303
    %v561 = vpack.c.b16 %v437, %v436
    %v562 = vpack.c.b16 %v439, %v438
    %v563 = vpack.c.b16 %v441, %v440
    %v564 = vpack.c.b16 %v443, %v442
    %v565 = vpack.c.b16 %v445, %v444
    %v566 = vpack.c.b16 %v447, %v446
    %v567 = vpack.c.b16 %v449, %v448
    %v568 = vpack.c.b16 %v451, %v450
    %v569 = vpack.c.b16 %v453, %v452
    %v570 = vpack.c.b16 %v455, %v454
    %v571 = vpack.c.b16 %v457, %v456
    %v572 = vpack.c.b16 %v459, %v458
    %v573 = vpack.c.b16 %v461, %v460
    %v574 = vpack.c.b16 %v463, %v462
    %v575 = vpack.c.b16 %v465, %v464
    %v576 = vpack.c.b16 %v467, %v466
    %v577 = vpack.c.b16 %v469, %v468
    %v578 = vpack.c.b16 %v471, %v470
    %v579 = vpack.c.b16 %v473, %v472
    %v580 = vpack.c.b16 %v475, %v474
    %v581 = vpack.c.b16 %v477, %v476
    %v582 = vpack.c.b16 %v479, %v478
    %v583 = vpack.c.b16 %v481, %v480
    %v584 = vpack.c.b16 %v483, %v482
    %v585 = vpack.c.b16 %v485, %v484
    %v586 = vpack.c.b16 %v487, %v486
    %v587 = vpack.c.b16 %v489, %v488
    %v588 = vpack.c.b16 %v491, %v490
    %v589 = vpack.c.b16 %v493, %v492
    %v590 = vpack.c.b16 %v495, %v494
    %v591 = vpack.c.b16 %v497, %v496
    %v592 = vpack.c.b16 %v499, %v498
    %v593 = vpack.c.b16 %v501, %v500
    %v594 = vpack.c.b16 %v503, %v502
    %v595 = vpack.c.b16 %v505, %v504
    %v596 = vpack.c.b16 %v507, %v506
    %v597 = vpack.c.b16 %v509, %v508
    %v598 = vpack.c.b16 %v511, %v510
    %v599 = vpack.c.b16 %v513, %v512
    %v600 = vpack.c.b16 %v515, %v514
    %v601 = vpack.c.b16 %v517, %v516
    %v602 = vpack.c.b16 %v519, %v518
    %v603 = vpack.c.b16 %v521, %v520
    %v604 = vpack.c.b16 %v523, %v522
    %v605 = vpack.c.b16 %v525, %v524
    %v606 = vpack.c.b16 %v527, %v526
    %v607 = vpack.c.b16 %v529, %v528
    %v608 = vpack.c.b16 %v531, %v530
    %v609 = vpack.c.b16 %v533, %v532
    %v610 = vpack.c.b16 %v535, %v534
    %v611 = vpack.c.b16 %v537, %v536
    %v612 = vpack.c.b16 %v539, %v538
    %v613 = vpack.c.b16 %v541, %v540
    %v614 = vpack.c.b16 %v543, %v542
    %v615 = vpack.c.b16 %v545, %v544
    %v616 = vpack.c.b16 %v547, %v546
    %v617 = vpack.c.b16 %v549, %v548
    %v618 = vpack.c.b16 %v551, %v550
    %v619 = vpack.c.b16 %v553, %v552
    %v620 = vpack.c.b16 %v555, %v554
    %v621 = vpack.c.b16 %v557, %v556
    %v622 = vpack.c.b16 %v559, %v558
    %v623 = vpack.c.b16 %v560, %v560
    %vm686 = vcmask 850944
    %v688 = vsel %vm686, %v154, 0
    %v691 = vsel %vm686, %v162, 0
    %v694 = vsel %vm686, %v170, 0
    %v697 = vsel %vm686, %v178, 0
    %vm699 = vcmask 1043456
    %v701 = vsel %vm699, %v623, 0
    %703 = vmatprep.subr.bf16.mxu0 0
    %704 = vmatpush1.bf16.msra.mxu0 %v568
    %705 = vmatprep.subr.bf16.mxu0 0
    %706 = vmatpush1.bf16.msra.mxu0 %v567
    %707 = vmatprep.subr.bf16.mxu0 0
    %708 = vmatpush1.bf16.msra.mxu0 %v566
    %709 = vmatprep.subr.bf16.mxu0 0
    %710 = vmatpush1.bf16.msra.mxu0 %v565
    %711 = vmatprep.subr.bf16.mxu0 0
    %712 = vmatpush1.bf16.msra.mxu0 %v564
    %713 = vmatprep.subr.bf16.mxu0 0
    %714 = vmatpush1.bf16.msra.mxu0 %v563
    %715 = vmatprep.subr.bf16.mxu0 0
    %716 = vmatpush1.bf16.msra.mxu0 %v562
    %717 = vmatprep.subr.bf16.mxu0 0
    %718 = vmatpush1.bf16.msra.mxu0 %v561
    %719 = vmatprep.subr.bf16.mxu0 0
    %720 = vmatpush2.bf16.msra.mxu0 %v576
    %721 = vmatprep.subr.bf16.mxu0 0
    %722 = vmatpush2.bf16.msra.mxu0 %v575
    %723 = vmatprep.subr.bf16.mxu0 0
    %724 = vmatpush2.bf16.msra.mxu0 %v574
    %725 = vmatprep.subr.bf16.mxu0 0
    %726 = vmatpush2.bf16.msra.mxu0 %v573
    %727 = vmatprep.subr.bf16.mxu0 0
    %728 = vmatpush2.bf16.msra.mxu0 %v572
    %729 = vmatprep.subr.bf16.mxu0 0
    %730 = vmatpush2.bf16.msra.mxu0 %v571
    %731 = vmatprep.subr.bf16.mxu0 0
    %732 = vmatpush2.bf16.msra.mxu0 %v570
    %733 = vmatprep.subr.bf16.mxu0 0
    %734 = vmatpush2.bf16.msra.mxu0 %v569
    %735 = vmatprep.mubr.bf16.mxu0 %v148
    %736 = vmatmul.mubr.bf16.gmra.mxu0 %v147
    %v737 = vpop.f32.mrf.mxu0
    %v738 = vadd.f32 %v309, %v737
    %v739 = vpop.f32.mrf.mxu0
    %v740 = vpop.f32.mrf.mxu0
    %v741 = vadd.f32 %v309, %v740
    %v742 = vpop.f32.mrf.mxu0
    %743 = vmatprep.mubr.bf16.mxu0 %v156
    %744 = vmatmul.mubr.bf16.gmra.mxu0 %v155
    %v745 = vpop.f32.mrf.mxu0
    %v746 = vadd.f32 %v309, %v745
    %v747 = vpop.f32.mrf.mxu0
    %v748 = vpop.f32.mrf.mxu0
    %v749 = vadd.f32 %v309, %v748
    %v750 = vpop.f32.mrf.mxu0
    %751 = vmatprep.mubr.bf16.mxu0 %v164
    %752 = vmatmul.mubr.bf16.gmra.mxu0 %v163
    %v753 = vpop.f32.mrf.mxu0
    %v754 = vadd.f32 %v309, %v753
    %v755 = vpop.f32.mrf.mxu0
    %v756 = vpop.f32.mrf.mxu0
    %v757 = vadd.f32 %v309, %v756
    %v758 = vpop.f32.mrf.mxu0
    %759 = vmatprep.mubr.bf16.mxu0 %v172
    %760 = vmatmul.mubr.bf16.gmra.mxu0 %v171
    %v761 = vpop.f32.mrf.mxu0
    %v762 = vadd.f32 %v309, %v761
    %v763 = vpop.f32.mrf.mxu0
    %v764 = vpop.f32.mrf.mxu0
    %v765 = vadd.f32 %v309, %v764
    %v766 = vpop.f32.mrf.mxu0
    %767 = vdwg.mxu0
    %768 = vmatprep.subr.bf16.mxu0 0
    %769 = vmatpush1.bf16.msra.mxu0 %v584
    %770 = vmatprep.subr.bf16.mxu0 0
    %771 = vmatpush1.bf16.msra.mxu0 %v583
    %772 = vmatprep.subr.bf16.mxu0 0
    %773 = vmatpush1.bf16.msra.mxu0 %v582
    %774 = vmatprep.subr.bf16.mxu0 0
    %775 = vmatpush1.bf16.msra.mxu0 %v581
    %776 = vmatprep.subr.bf16.mxu0 0
    %777 = vmatpush1.bf16.msra.mxu0 %v580
    %778 = vmatprep.subr.bf16.mxu0 0
    %779 = vmatpush1.bf16.msra.mxu0 %v579
    %780 = vmatprep.subr.bf16.mxu0 0
    %781 = vmatpush1.bf16.msra.mxu0 %v578
    %782 = vmatprep.subr.bf16.mxu0 0
    %783 = vmatpush1.bf16.msra.mxu0 %v577
    %784 = vmatprep.subr.bf16.mxu0 0
    %785 = vmatpush2.bf16.msra.mxu0 %v592
    %786 = vmatprep.subr.bf16.mxu0 0
    %787 = vmatpush2.bf16.msra.mxu0 %v591
    %788 = vmatprep.subr.bf16.mxu0 0
    %789 = vmatpush2.bf16.msra.mxu0 %v590
    %790 = vmatprep.subr.bf16.mxu0 0
    %791 = vmatpush2.bf16.msra.mxu0 %v589
    %792 = vmatprep.subr.bf16.mxu0 0
    %793 = vmatpush2.bf16.msra.mxu0 %v588
    %794 = vmatprep.subr.bf16.mxu0 0
    %795 = vmatpush2.bf16.msra.mxu0 %v587
    %796 = vmatprep.subr.bf16.mxu0 0
    %797 = vmatpush2.bf16.msra.mxu0 %v586
    %798 = vmatprep.subr.bf16.mxu0 0
    %799 = vmatpush2.bf16.msra.mxu0 %v585
    %800 = vmatprep.mubr.bf16.mxu0 %v150
    %801 = vmatmul.mubr.bf16.gmra.mxu0 %v149
    %v802 = vpop.f32.mrf.mxu0
    %v803 = vadd.f32 %v738, %v802
    %v804 = vpop.f32.mrf.mxu0
    %v805 = vpop.f32.mrf.mxu0
    %v806 = vadd.f32 %v741, %v805
    %v807 = vpop.f32.mrf.mxu0
    %808 = vmatprep.mubr.bf16.mxu0 %v158
    %809 = vmatmul.mubr.bf16.gmra.mxu0 %v157
    %v810 = vpop.f32.mrf.mxu0
    %v811 = vadd.f32 %v746, %v810
    %v812 = vpop.f32.mrf.mxu0
    %v813 = vpop.f32.mrf.mxu0
    %v814 = vadd.f32 %v749, %v813
    %v815 = vpop.f32.mrf.mxu0
    %816 = vmatprep.mubr.bf16.mxu0 %v166
    %817 = vmatmul.mubr.bf16.gmra.mxu0 %v165
    %v818 = vpop.f32.mrf.mxu0
    %v819 = vadd.f32 %v754, %v818
    %v820 = vpop.f32.mrf.mxu0
    %v821 = vpop.f32.mrf.mxu0
    %v822 = vadd.f32 %v757, %v821
    %v823 = vpop.f32.mrf.mxu0
    %824 = vmatprep.mubr.bf16.mxu0 %v174
    %825 = vmatmul.mubr.bf16.gmra.mxu0 %v173
    %v826 = vpop.f32.mrf.mxu0
    %v827 = vadd.f32 %v762, %v826
    %v828 = vpop.f32.mrf.mxu0
    %v829 = vpop.f32.mrf.mxu0
    %v830 = vadd.f32 %v765, %v829
    %v831 = vpop.f32.mrf.mxu0
    %832 = vdwg.mxu0
    %833 = vmatprep.subr.bf16.mxu0 0
    %834 = vmatpush1.bf16.msra.mxu0 %v600
    %835 = vmatprep.subr.bf16.mxu0 0
    %836 = vmatpush1.bf16.msra.mxu0 %v599
    %837 = vmatprep.subr.bf16.mxu0 0
    %838 = vmatpush1.bf16.msra.mxu0 %v598
    %839 = vmatprep.subr.bf16.mxu0 0
    %840 = vmatpush1.bf16.msra.mxu0 %v597
    %841 = vmatprep.subr.bf16.mxu0 0
    %842 = vmatpush1.bf16.msra.mxu0 %v596
    %843 = vmatprep.subr.bf16.mxu0 0
    %844 = vmatpush1.bf16.msra.mxu0 %v595
    %845 = vmatprep.subr.bf16.mxu0 0
    %846 = vmatpush1.bf16.msra.mxu0 %v594
    %847 = vmatprep.subr.bf16.mxu0 0
    %848 = vmatpush1.bf16.msra.mxu0 %v593
    %849 = vmatprep.subr.bf16.mxu0 0
    %850 = vmatpush2.bf16.msra.mxu0 %v608
    %851 = vmatprep.subr.bf16.mxu0 0
    %852 = vmatpush2.bf16.msra.mxu0 %v607
    %853 = vmatprep.subr.bf16.mxu0 0
    %854 = vmatpush2.bf16.msra.mxu0 %v606
    %855 = vmatprep.subr.bf16.mxu0 0
    %856 = vmatpush2.bf16.msra.mxu0 %v605
    %857 = vmatprep.subr.bf16.mxu0 0
    %858 = vmatpush2.bf16.msra.mxu0 %v604
    %859 = vmatprep.subr.bf16.mxu0 0
    %860 = vmatpush2.bf16.msra.mxu0 %v603
    %861 = vmatprep.subr.bf16.mxu0 0
    %862 = vmatpush2.bf16.msra.mxu0 %v602
    %863 = vmatprep.subr.bf16.mxu0 0
    %864 = vmatpush2.bf16.msra.mxu0 %v601
    %865 = vmatprep.mubr.bf16.mxu0 %v152
    %866 = vmatmul.mubr.bf16.gmra.mxu0 %v151
    %v867 = vpop.f32.mrf.mxu0
    %v868 = vadd.f32 %v803, %v867
    %v869 = vpop.f32.mrf.mxu0
    %v870 = vpop.f32.mrf.mxu0
    %v871 = vadd.f32 %v806, %v870
    %v872 = vpop.f32.mrf.mxu0
    %873 = vmatprep.mubr.bf16.mxu0 %v160
    %874 = vmatmul.mubr.bf16.gmra.mxu0 %v159
    %v875 = vpop.f32.mrf.mxu0
    %v876 = vadd.f32 %v811, %v875
    %v877 = vpop.f32.mrf.mxu0
    %v878 = vpop.f32.mrf.mxu0
    %v879 = vadd.f32 %v814, %v878
    %v880 = vpop.f32.mrf.mxu0
    %881 = vmatprep.mubr.bf16.mxu0 %v168
    %882 = vmatmul.mubr.bf16.gmra.mxu0 %v167
    %v883 = vpop.f32.mrf.mxu0
    %v884 = vadd.f32 %v819, %v883
    %v885 = vpop.f32.mrf.mxu0
    %v886 = vpop.f32.mrf.mxu0
    %v887 = vadd.f32 %v822, %v886
    %v888 = vpop.f32.mrf.mxu0
    %889 = vmatprep.mubr.bf16.mxu0 %v176
    %890 = vmatmul.mubr.bf16.gmra.mxu0 %v175
    %v891 = vpop.f32.mrf.mxu0
    %v892 = vadd.f32 %v827, %v891
    %v893 = vpop.f32.mrf.mxu0
    %v894 = vpop.f32.mrf.mxu0
    %v895 = vadd.f32 %v830, %v894
    %v896 = vpop.f32.mrf.mxu0
    %897 = vdwg.mxu0
    %898 = vmatprep.subr.bf16.mxu0 0
    %899 = vmatpush1.bf16.msra.mxu0 %v616
    %900 = vmatprep.subr.bf16.mxu0 0
    %901 = vmatpush1.bf16.msra.mxu0 %v615
    %902 = vmatprep.subr.bf16.mxu0 0
    %903 = vmatpush1.bf16.msra.mxu0 %v614
    %904 = vmatprep.subr.bf16.mxu0 0
    %905 = vmatpush1.bf16.msra.mxu0 %v613
    %906 = vmatprep.subr.bf16.mxu0 0
    %907 = vmatpush1.bf16.msra.mxu0 %v612
    %908 = vmatprep.subr.bf16.mxu0 0
    %909 = vmatpush1.bf16.msra.mxu0 %v611
    %910 = vmatprep.subr.bf16.mxu0 0
    %911 = vmatpush1.bf16.msra.mxu0 %v610
    %912 = vmatprep.subr.bf16.mxu0 0
    %913 = vmatpush1.bf16.msra.mxu0 %v609
    %914 = vmatprep.subr.bf16.mxu0 0
    %915 = vmatpush2.bf16.msra.mxu0 0
    %916 = vmatprep.subr.bf16.mxu0 0
    %917 = vmatpush2.bf16.msra.mxu0 %v701
    %918 = vmatprep.subr.bf16.mxu0 0
    %919 = vmatpush2.bf16.msra.mxu0 %v622
    %920 = vmatprep.subr.bf16.mxu0 0
    %921 = vmatpush2.bf16.msra.mxu0 %v621
    %922 = vmatprep.subr.bf16.mxu0 0
    %923 = vmatpush2.bf16.msra.mxu0 %v620
    %924 = vmatprep.subr.bf16.mxu0 0
    %925 = vmatpush2.bf16.msra.mxu0 %v619
    %926 = vmatprep.subr.bf16.mxu0 0
    %927 = vmatpush2.bf16.msra.mxu0 %v618
    %928 = vmatprep.subr.bf16.mxu0 0
    %929 = vmatpush2.bf16.msra.mxu0 %v617
    %930 = vmatprep.mubr.bf16.mxu0 %v688
    %931 = vmatmul.mubr.bf16.gmra.mxu0 %v153
    %v932 = vpop.f32.mrf.mxu0
    %v933 = vadd.f32 %v868, %v932
    %v934 = vpop.f32.mrf.mxu0
    %v935 = vpop.f32.mrf.mxu0
    %v936 = vadd.f32 %v871, %v935
    %v937 = vpop.f32.mrf.mxu0
    %938 = vmatprep.mubr.bf16.mxu0 %v691
    %939 = vmatmul.mubr.bf16.gmra.mxu0 %v161
    %v940 = vpop.f32.mrf.mxu0
    %v941 = vadd.f32 %v876, %v940
    %v942 = vpop.f32.mrf.mxu0
    %v943 = vpop.f32.mrf.mxu0
    %v944 = vadd.f32 %v879, %v943
    %v945 = vpop.f32.mrf.mxu0
    %946 = vmatprep.mubr.bf16.mxu0 %v694
    %947 = vmatmul.mubr.bf16.gmra.mxu0 %v169
    %v948 = vpop.f32.mrf.mxu0
    %v949 = vadd.f32 %v884, %v948
    %v950 = vpop.f32.mrf.mxu0
    %v951 = vpop.f32.mrf.mxu0
    %v952 = vadd.f32 %v887, %v951
    %v953 = vpop.f32.mrf.mxu0
    %954 = vmatprep.mubr.bf16.mxu0 %v697
    %955 = vmatmul.mubr.bf16.gmra.mxu0 %v177
    %v956 = vpop.f32.mrf.mxu0
    %v957 = vadd.f32 %v892, %v956
    %v958 = vpop.f32.mrf.mxu0
    %v959 = vpop.f32.mrf.mxu0
    %v960 = vadd.f32 %v895, %v959
    %v961 = vpop.f32.mrf.mxu0
    %962 = vdwg.mxu0
    %v963 = vmax.f32 %v933, 0.0
    %v964 = vmax.f32 %v936, 0.0
    %v965 = vmax.f32 %v941, 0.0
    %v966 = vmax.f32 %v944, 0.0
    %v967 = vmax.f32 %v949, 0.0
    %v968 = vmax.f32 %v952, 0.0
    %v969 = vmax.f32 %v957, 0.0
    %v970 = vmax.f32 %v960, 0.0
    %v971 = vld [vmem:[#allocation7] sm:$0xf]
    %v972 = vld [vmem:[#allocation7 + $0x4] sm:$0xf]
    %v973 = vld [vmem:[#allocation7 + $0x8] sm:$0xf]
    %v974 = vld [vmem:[#allocation7 + $0xc] sm:$0xf]
    %v975 = vld [vmem:[#allocation7 + $0x10] sm:$0xf]
    %v976 = vld [vmem:[#allocation7 + $0x14] sm:$0xf]
    %v977 = vld [vmem:[#allocation7 + $0x18] sm:$0xf]
    %v978 = vld [vmem:[#allocation7 + $0x1c] sm:$0xf]
    %v979 = vld [vmem:[#allocation7 + $0x20] sm:$0xf]
    %v980 = vld [vmem:[#allocation7 + $0x24] sm:$0xf]
    %v981 = vld [vmem:[#allocation7 + $0x28] sm:$0xf]
    %v982 = vld [vmem:[#allocation7 + $0x2c] sm:$0xf]
    %v983 = vld [vmem:[#allocation7 + $0x30] sm:$0xf]
    %v984 = vld [vmem:[#allocation7 + $0x34] sm:$0xf]
    %v985 = vld [vmem:[#allocation7 + $0x38] sm:$0xf]
    %v986 = vld [vmem:[#allocation7 + $0x3c] sm:$0xf]
    %v987 = vld [vmem:[%s4] sm:$0x1]
    %v988 = vpack.c.bf16 %v964, %v963
    %v989 = vpack.c.bf16 %v966, %v965
    %v990 = vpack.c.bf16 %v968, %v967
    %v991 = vpack.c.bf16 %v970, %v969
    %v993 = vlaneseq
    %v994 = vshrl.u32 %v993, 7
    %v995 = vsub.s32 0, %v994
    %v996 = vrot.slane %v987, %v995
    %v1014 = vunpack.c.l.b16 %v971
    %v1015 = vunpack.c.l.b16 %v972
    %v1016 = vunpack.c.l.b16 %v973
    %v1017 = vunpack.c.l.b16 %v974
    %v1018 = vunpack.c.l.b16 %v975
    %v1019 = vunpack.c.l.b16 %v976
    %v1020 = vunpack.c.l.b16 %v977
    %v1021 = vunpack.c.l.b16 %v978
    %v1022 = vunpack.c.l.b16 %v979
    %v1023 = vunpack.c.l.b16 %v980
    %v1024 = vunpack.c.l.b16 %v981
    %v1025 = vunpack.c.l.b16 %v982
    %v1026 = vunpack.c.l.b16 %v983
    %v1027 = vunpack.c.l.b16 %v984
    %v1028 = vunpack.c.l.b16 %v985
    %v1029 = vunpack.c.l.b16 %v986
    %v1030 = vpack.c.b16 %v1015, %v1014
    %v1031 = vpack.c.b16 %v1017, %v1016
    %v1032 = vpack.c.b16 %v1019, %v1018
    %v1033 = vpack.c.b16 %v1021, %v1020
    %v1034 = vpack.c.b16 %v1023, %v1022
    %v1035 = vpack.c.b16 %v1025, %v1024
    %v1036 = vpack.c.b16 %v1027, %v1026
    %v1037 = vpack.c.b16 %v1029, %v1028
    %1046 = vmatprep.subr.bf16.mxu0 0
    %1047 = vmatpush1.bf16.msra.mxu0 %v1037
    %1048 = vmatprep.subr.bf16.mxu0 0
    %1049 = vmatpush1.bf16.msra.mxu0 %v1036
    %1050 = vmatprep.subr.bf16.mxu0 0
    %1051 = vmatpush1.bf16.msra.mxu0 %v1035
    %1052 = vmatprep.subr.bf16.mxu0 0
    %1053 = vmatpush1.bf16.msra.mxu0 %v1034
    %1054 = vmatprep.subr.bf16.mxu0 0
    %1055 = vmatpush1.bf16.msra.mxu0 %v1033
    %1056 = vmatprep.subr.bf16.mxu0 0
    %1057 = vmatpush1.bf16.msra.mxu0 %v1032
    %1058 = vmatprep.subr.bf16.mxu0 0
    %1059 = vmatpush1.bf16.msra.mxu0 %v1031
    %1060 = vmatprep.subr.bf16.mxu0 0
    %1061 = vmatpush1.bf16.msra.mxu0 %v1030
    %1062 = vmatprep.subr.bf16.mxu0 0
    %1063 = vmatpush2.bf16.msra.mxu0 0
    %1064 = vmatprep.subr.bf16.mxu0 0
    %1065 = vmatpush2.bf16.msra.mxu0 0
    %1066 = vmatprep.subr.bf16.mxu0 0
    %1067 = vmatpush2.bf16.msra.mxu0 0
    %1068 = vmatprep.subr.bf16.mxu0 0
    %1069 = vmatpush2.bf16.msra.mxu0 0
    %1070 = vmatprep.subr.bf16.mxu0 0
    %1071 = vmatpush2.bf16.msra.mxu0 0
    %1072 = vmatprep.subr.bf16.mxu0 0
    %1073 = vmatpush2.bf16.msra.mxu0 0
    %1074 = vmatprep.subr.bf16.mxu0 0
    %1075 = vmatpush2.bf16.msra.mxu0 0
    %1076 = vmatprep.subr.bf16.mxu0 0
    %1077 = vmatpush2.bf16.msra.mxu0 0
    %1078 = vmatprep.mubr.bf16.mxu0 0
    %1079 = vmatmul.mubr.bf16.gmra.mxu0 %v988
    %v1080 = vpop.f32.mrf.mxu0
    %v1081 = vadd.f32 %v996, %v1080
    %v1082 = vpop.f32.mrf.mxu0
    %v1083 = vpop.f32.mrf.mxu0
    %v1084 = vadd.f32 %v996, %v1083
    %v1085 = vpop.f32.mrf.mxu0
    %1086 = vmatprep.mubr.bf16.mxu0 0
    %1087 = vmatmul.mubr.bf16.gmra.mxu0 %v989
    %v1088 = vpop.f32.mrf.mxu0
    %v1089 = vadd.f32 %v996, %v1088
    %v1090 = vpop.f32.mrf.mxu0
    %v1091 = vpop.f32.mrf.mxu0
    %v1092 = vadd.f32 %v996, %v1091
    %v1093 = vpop.f32.mrf.mxu0
    %1094 = vmatprep.mubr.bf16.mxu0 0
    %1095 = vmatmul.mubr.bf16.gmra.mxu0 %v990
    %v1096 = vpop.f32.mrf.mxu0
    %v1097 = vadd.f32 %v996, %v1096
    %v1098 = vpop.f32.mrf.mxu0
    %v1099 = vpop.f32.mrf.mxu0
    %v1100 = vadd.f32 %v996, %v1099
    %v1101 = vpop.f32.mrf.mxu0
    %1102 = vmatprep.mubr.bf16.mxu0 0
    %1103 = vmatmul.mubr.bf16.gmra.mxu0 %v991
    %v1104 = vpop.f32.mrf.mxu0
    %v1105 = vadd.f32 %v996, %v1104
    %v1106 = vpop.f32.mrf.mxu0
    %v1107 = vpop.f32.mrf.mxu0
    %v1108 = vadd.f32 %v996, %v1107
    %v1109 = vpop.f32.mrf.mxu0
    %1110 = vdwg.mxu0
    %v1111 = vmax.f32 %v1081, 0.0
    %v1112 = vmax.f32 %v1084, 0.0
    %v1113 = vmax.f32 %v1089, 0.0
    %v1114 = vmax.f32 %v1092, 0.0
    %v1115 = vmax.f32 %v1097, 0.0
    %v1116 = vmax.f32 %v1100, 0.0
    %v1117 = vmax.f32 %v1105, 0.0
    %v1118 = vmax.f32 %v1108, 0.0
    %v1119 = vpack.c.bf16 %v1112, %v1111
    %v1120 = vpack.c.bf16 %v1114, %v1113
    %v1121 = vpack.c.bf16 %v1116, %v1115
    %v1122 = vpack.c.bf16 %v1118, %v1117
    %1123 = vmatprep.subr.bf16.mxu0 0
    %1124 = vmatpush1.bf16.msra.mxu0 %v1037
    %1125 = vmatprep.subr.bf16.mxu0 0
    %1126 = vmatpush1.bf16.msra.mxu0 %v1036
    %1127 = vmatprep.subr.bf16.mxu0 0
    %1128 = vmatpush1.bf16.msra.mxu0 %v1035
    %1129 = vmatprep.subr.bf16.mxu0 0
    %1130 = vmatpush1.bf16.msra.mxu0 %v1034
    %1131 = vmatprep.subr.bf16.mxu0 0
    %1132 = vmatpush1.bf16.msra.mxu0 %v1033
    %1133 = vmatprep.subr.bf16.mxu0 0
    %1134 = vmatpush1.bf16.msra.mxu0 %v1032
    %1135 = vmatprep.subr.bf16.mxu0 0
    %1136 = vmatpush1.bf16.msra.mxu0 %v1031
    %1137 = vmatprep.subr.bf16.mxu0 0
    %1138 = vmatpush1.bf16.msra.mxu0 %v1030
    %1139 = vmatprep.subr.bf16.mxu0 0
    %1140 = vmatpush2.bf16.msra.mxu0 0
    %1141 = vmatprep.subr.bf16.mxu0 0
    %1142 = vmatpush2.bf16.msra.mxu0 0
    %1143 = vmatprep.subr.bf16.mxu0 0
    %1144 = vmatpush2.bf16.msra.mxu0 0
    %1145 = vmatprep.subr.bf16.mxu0 0
    %1146 = vmatpush2.bf16.msra.mxu0 0
    %1147 = vmatprep.subr.bf16.mxu0 0
    %1148 = vmatpush2.bf16.msra.mxu0 0
    %1149 = vmatprep.subr.bf16.mxu0 0
    %1150 = vmatpush2.bf16.msra.mxu0 0
    %1151 = vmatprep.subr.bf16.mxu0 0
    %1152 = vmatpush2.bf16.msra.mxu0 0
    %1153 = vmatprep.subr.bf16.mxu0 0
    %1154 = vmatpush2.bf16.msra.mxu0 0
    %1155 = vmatprep.mubr.bf16.mxu0 0
    %1156 = vmatmul.mubr.bf16.gmra.mxu0 %v1119
    %v1157 = vpop.f32.mrf.mxu0
    %v1158 = vadd.f32 %v996, %v1157
    %v1159 = vpop.f32.mrf.mxu0
    %v1160 = vpop.f32.mrf.mxu0
    %v1161 = vadd.f32 %v996, %v1160
    %v1162 = vpop.f32.mrf.mxu0
    %1163 = vmatprep.mubr.bf16.mxu0 0
    %1164 = vmatmul.mubr.bf16.gmra.mxu0 %v1120
    %v1165 = vpop.f32.mrf.mxu0
    %v1166 = vadd.f32 %v996, %v1165
    %v1167 = vpop.f32.mrf.mxu0
    %v1168 = vpop.f32.mrf.mxu0
    %v1169 = vadd.f32 %v996, %v1168
    %v1170 = vpop.f32.mrf.mxu0
    %1171 = vmatprep.mubr.bf16.mxu0 0
    %1172 = vmatmul.mubr.bf16.gmra.mxu0 %v1121
    %v1173 = vpop.f32.mrf.mxu0
    %v1174 = vadd.f32 %v996, %v1173
    %v1175 = vpop.f32.mrf.mxu0
    %v1176 = vpop.f32.mrf.mxu0
    %v1177 = vadd.f32 %v996, %v1176
    %v1178 = vpop.f32.mrf.mxu0
    %1179 = vmatprep.mubr.bf16.mxu0 0
    %1180 = vmatmul.mubr.bf16.gmra.mxu0 %v1122
    %v1181 = vpop.f32.mrf.mxu0
    %v1182 = vadd.f32 %v996, %v1181
    %v1183 = vpop.f32.mrf.mxu0
    %v1184 = vpop.f32.mrf.mxu0
    %v1185 = vadd.f32 %v996, %v1184
    %v1186 = vpop.f32.mrf.mxu0
    %1187 = vdwg.mxu0
    %v1188 = vmax.f32 %v1158, 0.0
    %v1189 = vmax.f32 %v1161, 0.0
    %v1190 = vmax.f32 %v1166, 0.0
    %v1191 = vmax.f32 %v1169, 0.0
    %v1192 = vmax.f32 %v1174, 0.0
    %v1193 = vmax.f32 %v1177, 0.0
    %v1194 = vmax.f32 %v1182, 0.0
    %v1195 = vmax.f32 %v1185, 0.0
    %v1196 = vpack.c.bf16 %v1189, %v1188
    %v1197 = vpack.c.bf16 %v1191, %v1190
    %v1198 = vpack.c.bf16 %v1193, %v1192
    %v1199 = vpack.c.bf16 %v1195, %v1194
    %1200 = vmatprep.subr.bf16.mxu0 0
    %1201 = vmatpush1.bf16.msra.mxu0 %v1037
    %1202 = vmatprep.subr.bf16.mxu0 0
    %1203 = vmatpush1.bf16.msra.mxu0 %v1036
    %1204 = vmatprep.subr.bf16.mxu0 0
    %1205 = vmatpush1.bf16.msra.mxu0 %v1035
    %1206 = vmatprep.subr.bf16.mxu0 0
    %1207 = vmatpush1.bf16.msra.mxu0 %v1034
    %1208 = vmatprep.subr.bf16.mxu0 0
    %1209 = vmatpush1.bf16.msra.mxu0 %v1033
    %1210 = vmatprep.subr.bf16.mxu0 0
    %1211 = vmatpush1.bf16.msra.mxu0 %v1032
    %1212 = vmatprep.subr.bf16.mxu0 0
    %1213 = vmatpush1.bf16.msra.mxu0 %v1031
    %1214 = vmatprep.subr.bf16.mxu0 0
    %1215 = vmatpush1.bf16.msra.mxu0 %v1030
    %1216 = vmatprep.subr.bf16.mxu0 0
    %1217 = vmatpush2.bf16.msra.mxu0 0
    %1218 = vmatprep.subr.bf16.mxu0 0
    %1219 = vmatpush2.bf16.msra.mxu0 0
    %1220 = vmatprep.subr.bf16.mxu0 0
    %1221 = vmatpush2.bf16.msra.mxu0 0
    %1222 = vmatprep.subr.bf16.mxu0 0
    %1223 = vmatpush2.bf16.msra.mxu0 0
    %1224 = vmatprep.subr.bf16.mxu0 0
    %1225 = vmatpush2.bf16.msra.mxu0 0
    %1226 = vmatprep.subr.bf16.mxu0 0
    %1227 = vmatpush2.bf16.msra.mxu0 0
    %1228 = vmatprep.subr.bf16.mxu0 0
    %1229 = vmatpush2.bf16.msra.mxu0 0
    %1230 = vmatprep.subr.bf16.mxu0 0
    %1231 = vmatpush2.bf16.msra.mxu0 0
    %1232 = vmatprep.mubr.bf16.mxu0 0
    %1233 = vmatmul.mubr.bf16.gmra.mxu0 %v1196
    %v1234 = vpop.f32.mrf.mxu0
    %v1235 = vadd.f32 %v996, %v1234
    %v1236 = vpop.f32.mrf.mxu0
    %v1237 = vpop.f32.mrf.mxu0
    %v1238 = vadd.f32 %v996, %v1237
    %v1239 = vpop.f32.mrf.mxu0
    %1240 = vmatprep.mubr.bf16.mxu0 0
    %1241 = vmatmul.mubr.bf16.gmra.mxu0 %v1197
    %v1242 = vpop.f32.mrf.mxu0
    %v1243 = vadd.f32 %v996, %v1242
    %v1244 = vpop.f32.mrf.mxu0
    %v1245 = vpop.f32.mrf.mxu0
    %v1246 = vadd.f32 %v996, %v1245
    %v1247 = vpop.f32.mrf.mxu0
    %1248 = vmatprep.mubr.bf16.mxu0 0
    %1249 = vmatmul.mubr.bf16.gmra.mxu0 %v1198
    %v1250 = vpop.f32.mrf.mxu0
    %v1251 = vadd.f32 %v996, %v1250
    %v1252 = vpop.f32.mrf.mxu0
    %v1253 = vpop.f32.mrf.mxu0
    %v1254 = vadd.f32 %v996, %v1253
    %v1255 = vpop.f32.mrf.mxu0
    %1256 = vmatprep.mubr.bf16.mxu0 0
    %1257 = vmatmul.mubr.bf16.gmra.mxu0 %v1199
    %v1258 = vpop.f32.mrf.mxu0
    %v1259 = vadd.f32 %v996, %v1258
    %v1260 = vpop.f32.mrf.mxu0
    %v1261 = vpop.f32.mrf.mxu0
    %v1262 = vadd.f32 %v996, %v1261
    %v1263 = vpop.f32.mrf.mxu0
    %1264 = vdwg.mxu0
    %v1265 = vmax.f32 %v1235, 0.0
    %v1266 = vmax.f32 %v1238, 0.0
    %v1267 = vmax.f32 %v1243, 0.0
    %v1268 = vmax.f32 %v1246, 0.0
    %v1269 = vmax.f32 %v1251, 0.0
    %v1270 = vmax.f32 %v1254, 0.0
    %v1271 = vmax.f32 %v1259, 0.0
    %v1272 = vmax.f32 %v1262, 0.0
    %v1273 = vpack.c.bf16 %v1266, %v1265
    %v1274 = vpack.c.bf16 %v1268, %v1267
    %v1275 = vpack.c.bf16 %v1270, %v1269
    %v1276 = vpack.c.bf16 %v1272, %v1271
    %v1277 = vld [vmem:[#allocation8] sm:$0xf]
    %v1278 = vld [vmem:[#allocation8 + $0x4] sm:$0xf]
    %v1279 = vld [vmem:[#allocation8 + $0x8] sm:$0xf]
    %v1280 = vld [vmem:[#allocation8 + $0xc] sm:$0xf]
    %v1281 = vld [vmem:[#allocation8 + $0x10] sm:$0xf]
    %v1282 = vld [vmem:[#allocation8 + $0x14] sm:$0xf]
    %v1283 = vld [vmem:[#allocation8 + $0x18] sm:$0xf]
    %v1284 = vld [vmem:[#allocation8 + $0x1c] sm:$0xf]
    %v1285 = vld [vmem:[#allocation8 + $0x20] sm:$0xf]
    %v1286 = vld [vmem:[#allocation8 + $0x24] sm:$0xf]
    %v1287 = vld [vmem:[#allocation8 + $0x28] sm:$0xf]
    %v1288 = vld [vmem:[#allocation8 + $0x2c] sm:$0xf]
    %v1289 = vld [vmem:[#allocation8 + $0x30] sm:$0xf]
    %v1290 = vld [vmem:[#allocation8 + $0x34] sm:$0xf]
    %v1291 = vld [vmem:[#allocation8 + $0x38] sm:$0xf]
    %v1292 = vld [vmem:[#allocation8 + $0x3c] sm:$0xf]
    %v1293 = vld [vmem:[%s6] sm:$0x1]
    %v1295 = vlaneseq
    %v1296 = vshrl.u32 %v1295, 7
    %v1297 = vsub.s32 0, %v1296
    %v1298 = vrot.slane %v1293, %v1297
    %v1316 = vunpack.c.l.b16 %v1277
    %v1317 = vunpack.c.l.b16 %v1278
    %v1318 = vunpack.c.l.b16 %v1279
    %v1319 = vunpack.c.l.b16 %v1280
    %v1320 = vunpack.c.l.b16 %v1281
    %v1321 = vunpack.c.l.b16 %v1282
    %v1322 = vunpack.c.l.b16 %v1283
    %v1323 = vunpack.c.l.b16 %v1284
    %v1324 = vunpack.c.l.b16 %v1285
    %v1325 = vunpack.c.l.b16 %v1286
    %v1326 = vunpack.c.l.b16 %v1287
    %v1327 = vunpack.c.l.b16 %v1288
    %v1328 = vunpack.c.l.b16 %v1289
    %v1329 = vunpack.c.l.b16 %v1290
    %v1330 = vunpack.c.l.b16 %v1291
    %v1331 = vunpack.c.l.b16 %v1292
    %v1332 = vpack.c.b16 %v1317, %v1316
    %v1333 = vpack.c.b16 %v1319, %v1318
    %v1334 = vpack.c.b16 %v1321, %v1320
    %v1335 = vpack.c.b16 %v1323, %v1322
    %v1336 = vpack.c.b16 %v1325, %v1324
    %v1337 = vpack.c.b16 %v1327, %v1326
    %v1338 = vpack.c.b16 %v1329, %v1328
    %v1339 = vpack.c.b16 %v1331, %v1330
    %1348 = vmatprep.subr.bf16.mxu0 0
    %1349 = vmatpush1.bf16.msra.mxu0 %v1339
    %1350 = vmatprep.subr.bf16.mxu0 0
    %1351 = vmatpush1.bf16.msra.mxu0 %v1338
    %1352 = vmatprep.subr.bf16.mxu0 0
    %1353 = vmatpush1.bf16.msra.mxu0 %v1337
    %1354 = vmatprep.subr.bf16.mxu0 0
    %1355 = vmatpush1.bf16.msra.mxu0 %v1336
    %1356 = vmatprep.subr.bf16.mxu0 0
    %1357 = vmatpush1.bf16.msra.mxu0 %v1335
    %1358 = vmatprep.subr.bf16.mxu0 0
    %1359 = vmatpush1.bf16.msra.mxu0 %v1334
    %1360 = vmatprep.subr.bf16.mxu0 0
    %1361 = vmatpush1.bf16.msra.mxu0 %v1333
    %1362 = vmatprep.subr.bf16.mxu0 0
    %1363 = vmatpush1.bf16.msra.mxu0 %v1332
    %1364 = vmatprep.subr.bf16.mxu0 0
    %1365 = vmatpush2.bf16.msra.mxu0 0
    %1366 = vmatprep.subr.bf16.mxu0 0
    %1367 = vmatpush2.bf16.msra.mxu0 0
    %1368 = vmatprep.subr.bf16.mxu0 0
    %1369 = vmatpush2.bf16.msra.mxu0 0
    %1370 = vmatprep.subr.bf16.mxu0 0
    %1371 = vmatpush2.bf16.msra.mxu0 0
    %1372 = vmatprep.subr.bf16.mxu0 0
    %1373 = vmatpush2.bf16.msra.mxu0 0
    %1374 = vmatprep.subr.bf16.mxu0 0
    %1375 = vmatpush2.bf16.msra.mxu0 0
    %1376 = vmatprep.subr.bf16.mxu0 0
    %1377 = vmatpush2.bf16.msra.mxu0 0
    %1378 = vmatprep.subr.bf16.mxu0 0
    %1379 = vmatpush2.bf16.msra.mxu0 0
    %1380 = vmatprep.mubr.bf16.mxu0 0
    %1381 = vmatmul.mubr.bf16.gmra.mxu0 %v1273
    %v1382 = vpop.f32.mrf.mxu0
    %v1383 = vadd.f32 %v1298, %v1382
    %v1384 = vpop.f32.mrf.mxu0
    %v1385 = vpop.f32.mrf.mxu0
    %v1386 = vadd.f32 %v1298, %v1385
    %v1387 = vpop.f32.mrf.mxu0
    %1388 = vmatprep.mubr.bf16.mxu0 0
    %1389 = vmatmul.mubr.bf16.gmra.mxu0 %v1274
    %v1390 = vpop.f32.mrf.mxu0
    %v1391 = vadd.f32 %v1298, %v1390
    %v1392 = vpop.f32.mrf.mxu0
    %v1393 = vpop.f32.mrf.mxu0
    %v1394 = vadd.f32 %v1298, %v1393
    %v1395 = vpop.f32.mrf.mxu0
    %1396 = vmatprep.mubr.bf16.mxu0 0
    %1397 = vmatmul.mubr.bf16.gmra.mxu0 %v1275
    %v1398 = vpop.f32.mrf.mxu0
    %v1399 = vadd.f32 %v1298, %v1398
    %v1400 = vpop.f32.mrf.mxu0
    %v1401 = vpop.f32.mrf.mxu0
    %v1402 = vadd.f32 %v1298, %v1401
    %v1403 = vpop.f32.mrf.mxu0
    %1404 = vmatprep.mubr.bf16.mxu0 0
    %1405 = vmatmul.mubr.bf16.gmra.mxu0 %v1276
    %v1406 = vpop.f32.mrf.mxu0
    %v1407 = vadd.f32 %v1298, %v1406
    %v1408 = vpop.f32.mrf.mxu0
    %v1409 = vpop.f32.mrf.mxu0
    %v1410 = vadd.f32 %v1298, %v1409
    %v1411 = vpop.f32.mrf.mxu0
    %1412 = vdwg.mxu0
    %1413 = vst [vmem:[#allocation10] sm:$0xff] %v1383
    %1414 = vst [vmem:[#allocation10 + $0x8] sm:$0xff] %v1386
    %1415 = vst [vmem:[#allocation10 + $0x10] sm:$0xff] %v1391
    %1416 = vst [vmem:[#allocation10 + $0x18] sm:$0xff] %v1394
    %1417 = vst [vmem:[#allocation10 + $0x20] sm:$0xff] %v1399
    %1418 = vst [vmem:[#allocation10 + $0x28] sm:$0xff] %v1402
    %1419 = vst [vmem:[#allocation10 + $0x30] sm:$0xff] %v1407
    %1420 = vst [vmem:[#allocation10 + $0x38] sm:$0xff] %v1410
    // Predicated region
    $region46: #{tpu_custom_call.1} parent=1 // pred_check
      _
    $region47: #{tpu_custom_call.1} parent=1 // pred_check_branch
      %1422 = sbr.rel (0) target = $region49
    $region48: #{tpu_custom_call.1} parent=1 // pred_region
      %s1424 = ssub.s32 1024, 1024
      %1425 = vsyncadd [#allocation4], %s1424
      %s1426 = sshll.u32 [#allocation10], 4
      %s1427 = int_to_ptr.vmem [resolvable:$true] %s1426
      %1432 = dma.vmem_to_hbm [thread:$0]  %s1427, 1024, %s7, [#allocation4], 128, 128, 8
    $region49: #{tpu_custom_call.1} parent=1 // pred_fallthru
      _
    // Predicated region
    $region50: #{tpu_custom_call.1} parent=1 // pred_check
      _
    $region51: #{tpu_custom_call.1} parent=1 // pred_check_branch
      %1434 = sbr.rel (0) target = $region53
    $region52: #{tpu_custom_call.1} parent=1 // pred_region
      %1435 = dma.done [#allocation4], 1024
    $region53: #{tpu_custom_call.1} parent=1 // pred_fallthru
      _
    %1436 = vsyncpa [#allocation3], 1
    %1437 = vsyncpa [#allocation6], 1
    %1438 = vsyncpa [#allocation9], 1
    %1439 = vsyncpa [#allocation4], 1

</llo_original>
